<compile_context>
chip_gen: v7x
topology: tpu7x:2x2x1
jax: 0.10.0
libtpu: 0.0.40
codegen_flags: <defaults>
</compile_context>

<pallas_src>
import jax
import jax.numpy as jnp
from jax.experimental import pallas as pl
from jax.experimental.pallas import tpu as pltpu

BN_EPS = 1e-5
LANE = 128            # lane-dim padding granule; can pass lane=256 to prepare_params on
                      # v6e/v7x if real hidden widths exceed 128 (2x256x256 MXU).
SUBLANE = 8
NEG_FILL = -1e30      # bias for padded logit columns -> softmax prob exactly 0


def _round_up(n, m):
    return ((n + m - 1) // m) * m


def _make_fused_mlp_kernel(num_hidden):
    """Fused kernel: x tile + (w, b) per layer (BN pre-folded) -> softmax probabilities."""

    def kernel(x_ref, *refs):
        o_ref = refs[-1]
        p = refs[:-1]                              # [w0, b0, w1, b1, ..., w_out, b_out]
        h = x_ref[...]                             # (TB, d_in_k) f32

        for l in range(num_hidden):
            w = p[2 * l][...]                      # (K, N_pad), f32 or bf16
            b = p[2 * l + 1][...]                  # (1, N_pad), f32
            y = jnp.dot(h.astype(w.dtype), w,
                        preferred_element_type=jnp.float32) + b
            h = jnp.maximum(y, 0.0)                # ReLU; Dropout is identity in eval

        w = p[-2][...]
        b = p[-1][...]                             # padded classes carry -1e30 bias
        logits = jnp.dot(h.astype(w.dtype), w,
                         preferred_element_type=jnp.float32) + b

        m = jnp.max(logits, axis=-1, keepdims=True)
        e = jnp.exp(logits - m)
        denom = jnp.sum(e, axis=-1, keepdims=True)
        # EUP approximate reciprocal + one Newton-Raphson step (~f32 exact, no wide divide).
        r = pl.reciprocal(denom, approx=True)
        r = r * (2.0 - denom * r)
        c_store = o_ref.shape[-1]                  # narrow HBM slab (round_up(classes, 8))
        o_ref[...] = (e[:, :c_store] * r).astype(o_ref.dtype)

    return kernel


def init_raw_params(key, input_size, hidden_layers, num_classes):
    """Raw parameters in PyTorch layout: Linear weight (out, in) / bias (out,),
    BatchNorm1d gamma/beta/running_mean/running_var (out,)."""
    params = {"hidden": [], "out": None}
    dims = [input_size] + list(hidden_layers)
    for i in range(len(hidden_layers)):
        din, dout = dims[i], dims[i + 1]
        key, kw, kb, km, kv = jax.random.split(key, 5)
        bound = 1.0 / float(din ** 0.5)
        w = jax.random.uniform(kw, (dout, din), jnp.float32, -bound, bound)
        b = jax.random.uniform(kb, (dout,), jnp.float32, -bound, bound)
        gamma = jnp.ones((dout,), jnp.float32)
        beta = jnp.zeros((dout,), jnp.float32)
        mean = 0.1 * jax.random.normal(km, (dout,), jnp.float32)
        var = 1.0 + 0.1 * jax.random.uniform(kv, (dout,), jnp.float32)
        params["hidden"].append((w, b, gamma, beta, mean, var))
    din = dims[-1]
    key, kw, kb = jax.random.split(key, 3)
    bound = 1.0 / float(din ** 0.5)
    w = jax.random.uniform(kw, (num_classes, din), jnp.float32, -bound, bound)
    b = jax.random.uniform(kb, (num_classes,), jnp.float32, -bound, bound)
    params["out"] = (w, b)
    return params


def mlp_forward_ref(x, raw_params):
    """Pure-JAX reference implementing the PyTorch eval-mode forward from raw params."""
    h = x
    for (w, b, gamma, beta, mean, var) in raw_params["hidden"]:
        y = h @ w.T + b
        y = (y - mean) * jax.lax.rsqrt(var + BN_EPS) * gamma + beta
        h = jnp.maximum(y, 0.0)
    w, b = raw_params["out"]
    return jax.nn.softmax(h @ w.T + b, axis=1)


def prepare_params(raw_params, weight_dtype=jnp.bfloat16, lane=LANE):
    """Fold BatchNorm (eval) into the Linear weights/bias, transpose to (in, out),
    and pad feature dims:

      * first-layer K: only rounded to the 8-sublane granule (no wasteful K=128 pad),
      * every layer's N (lane dim) and subsequent K: rounded to `lane` (128),
      * padded hidden cols: zero weight/bias -> ReLU(0)=0 (benign),
      * padded logit cols of the final layer: bias -1e30 -> softmax prob 0.

    Biases stay f32; weights cast to `weight_dtype` (bf16 default, MXU-native)."""
    folded = []
    for (w, b, gamma, beta, mean, var) in raw_params["hidden"]:
        scale = gamma * jax.lax.rsqrt(var + BN_EPS)      # (dout,)
        folded.append((w.T * scale[None, :], (b - mean) * scale + beta, 0.0))
    w, b = raw_params["out"]
    folded.append((w.T, b, NEG_FILL))

    prepared_layers = []
    for li, (w_f, b_f, bias_fill) in enumerate(folded):
        din, dout = w_f.shape
        din_p = _round_up(din, SUBLANE) if li == 0 else _round_up(din, lane)
        dout_p = _round_up(dout, lane)
        w_p = jnp.pad(w_f, ((0, din_p - din), (0, dout_p - dout))).astype(weight_dtype)
        b_p = jnp.pad(b_f, (0, dout_p - dout),
                      constant_values=bias_fill).reshape(1, dout_p).astype(jnp.float32)
        prepared_layers.append((w_p, b_p))

    d_in = raw_params["hidden"][0][0].shape[1] if raw_params["hidden"] \
        else raw_params["out"][0].shape[1]
    num_classes = raw_params["out"][0].shape[0]
    return {
        "layers": prepared_layers,
        "num_hidden": len(raw_params["hidden"]),
        "num_classes": num_classes,
        "d_in": d_in,
        "c_store": _round_up(num_classes, SUBLANE),   # narrow HBM output width
    }


def mlp_forward(x, prepared, *, batch_tile=None):
    """Fused MLP forward: one pallas_call over a batch-tiled 'parallel' grid."""
    b, d_in = x.shape
    assert d_in == prepared["d_in"]
    layers = prepared["layers"]
    num_hidden = prepared["num_hidden"]
    d_in_k = int(layers[0][0].shape[0])       # first-layer K (8-rounded d_in)
    c_pad = int(layers[-1][0].shape[1])       # lane-dense logits width
    c_store = prepared["c_store"]             # narrow HBM output width

    # Batch tile: the grid's only sizing knob.  Cap 1024 (x/out tiles are a few hundred
    # KiB at these widths, so double-buffered tiles + resident weights fit every chip).
    if batch_tile is None:
        batch_tile = min(_round_up(max(b, 1), SUBLANE), 1024)
    batch_tile = _round_up(batch_tile, SUBLANE)

    x_in = x.astype(jnp.float32)
    if d_in_k != d_in:                        # only if d_in is not 8-aligned (rare, tiny)
        x_in = jnp.pad(x_in, ((0, 0), (0, d_in_k - d_in)))
    b_rows = b
    if b < batch_tile:                        # tail pad only when batch < one tile
        x_in = jnp.pad(x_in, ((0, batch_tile - b), (0, 0)))
        b_rows = batch_tile
    # For b >= batch_tile, a ragged last tile is handled by Pallas (OOB writes dropped);
    # rows are independent through the MLP, so junk rows never contaminate real rows.

    # VMEM budget + cost estimate.
    param_bytes, flops = 0, 0
    for w, bias in layers:
        param_bytes += int(w.size) * w.dtype.itemsize + int(bias.size) * bias.dtype.itemsize
        flops += 2 * b_rows * int(w.shape[0]) * int(w.shape[1])
    max_width = max(max(int(w.shape[1]) for w, _ in layers), d_in_k)
    io_tile_bytes = 2 * batch_tile * (d_in_k + c_store) * 4
    act_bytes = 4 * batch_tile * max_width * 4
    vmem_limit = int(min(128 * 2**20,
                         max(32 * 2**20,
                             2 * param_bytes + io_tile_bytes + act_bytes + (4 << 20))))
    cost = pl.CostEstimate(
        flops=int(flops),
        transcendentals=int(b_rows * c_pad),
        bytes_accessed=int(b_rows * d_in_k * 4 + param_bytes + b_rows * c_store * 4))

    def _call(single_buffer_params):
        def param_spec(shape):
            # Constant index_map -> weights/biases stay VMEM-resident across batch tiles;
            # Buffered(1) avoids a useless second buffer for these constant blocks.
            if single_buffer_params:
                return pl.BlockSpec(shape, lambda i: (0, 0),
                                    pipeline_mode=pl.Buffered(1))
            return pl.BlockSpec(shape, lambda i: (0, 0))

        in_specs = [pl.BlockSpec((batch_tile, d_in_k), lambda i: (i, 0))]
        flat_params = []
        for w, bias in layers:
            flat_params += [w, bias]
            in_specs.append(param_spec(w.shape))
            in_specs.append(param_spec(bias.shape))

        return pl.pallas_call(
            _make_fused_mlp_kernel(num_hidden),
            out_shape=jax.ShapeDtypeStruct((b_rows, c_store), jnp.float32),
            grid=(pl.cdiv(b_rows, batch_tile),),
            in_specs=in_specs,
            out_specs=pl.BlockSpec((batch_tile, c_store), lambda i: (i, 0)),
            compiler_params=pltpu.CompilerParams(
                dimension_semantics=("parallel",),   # batch tiles shard across TCs
                vmem_limit_bytes=vmem_limit),
            cost_estimate=cost,
        )(x_in, *flat_params)

    try:
        out = _call(True)
    except Exception:
        # pl.Buffered(1) not supported by this jax/libtpu build -> default buffering.
        out = _call(False)

    return out[:b, :prepared["num_classes"]]


if __name__ == "__main__":
    # Shapes consistent with the module's forward: 2-D (batch, features) input.
    # TODO(synk): the surrounding app.py sets hidden_layers=[] which would crash the
    #             PyTorch module (hidden_layers[0]); we use a non-empty config instead.
    batch, input_size, hidden_dims, num_classes = 8, 32, [64, 32], 4

    key = jax.random.PRNGKey(0)
    key, k_x, k_p = jax.random.split(key, 3)
    x = jax.random.normal(k_x, (batch, input_size), jnp.float32)
    raw = init_raw_params(k_p, input_size, hidden_dims, num_classes)

    ref = mlp_forward_ref(x, raw)

    # f32 weights: exact path, works on every TPU generation.
    out_f32 = jax.block_until_ready(mlp_forward(x, prepare_params(raw, jnp.float32)))
    assert out_f32.shape == (batch, num_classes)
    assert jnp.allclose(jnp.sum(out_f32, axis=1), 1.0, atol=1e-4)
    assert jnp.allclose(out_f32, ref, atol=1e-4, rtol=1e-4)

    # bf16 weights (default): MXU-friendly on v5e/v6e/v7x, f32 accumulate + f32 epilogue.
    out_bf16 = jax.block_until_ready(mlp_forward(x, prepare_params(raw)))
    assert out_bf16.shape == (batch, num_classes)
    assert jnp.allclose(jnp.sum(out_bf16, axis=1), 1.0, atol=1e-3)
    assert jnp.allclose(out_bf16, ref, atol=5e-2)

    # Ragged-batch path: batch not a multiple of batch_tile exercises the cdiv grid
    # (last tile is ragged; out-of-bounds output rows are dropped by Pallas).
    x2 = jax.random.normal(jax.random.PRNGKey(1), (13, input_size), jnp.float32)
    ref2 = mlp_forward_ref(x2, raw)
    out2 = jax.block_until_ready(
        mlp_forward(x2, prepare_params(raw, jnp.float32), batch_tile=8))
    assert out2.shape == (13, num_classes)
    assert jnp.allclose(out2, ref2, atol=1e-4, rtol=1e-4)

    print("KERNEL_OK")
</pallas_src>

<mosaic_0001>
module attributes {stable_mosaic.version = 11 : i64} {
  func.func @kernel(%arg0: i32, %arg1: memref<8x32xf32, #tpu.memory_space<vmem>>, %arg2: memref<32x128xf32, #tpu.memory_space<vmem>>, %arg3: memref<1x128xf32, #tpu.memory_space<vmem>>, %arg4: memref<128x128xf32, #tpu.memory_space<vmem>>, %arg5: memref<1x128xf32, #tpu.memory_space<vmem>>, %arg6: memref<128x128xf32, #tpu.memory_space<vmem>>, %arg7: memref<1x128xf32, #tpu.memory_space<vmem>>, %arg8: memref<8x8xf32, #tpu.memory_space<vmem>>) attributes {dimension_semantics = [#tpu.dimension_semantics<parallel>], iteration_bounds = array<i64: 1>, scalar_prefetch = 0 : i64, scratch_operands = 0 : i64, tpu.core_type = #tpu.core_type<tc>, window_params = [{transform_indices = @transform_0, window_bounds = array<i64: 8, 32>}, {pipeline_mode = #tpu.pipeline_mode<synchronous>, transform_indices = @transform_1, window_bounds = array<i64: 32, 128>}, {pipeline_mode = #tpu.pipeline_mode<synchronous>, transform_indices = @transform_2, window_bounds = array<i64: 1, 128>}, {pipeline_mode = #tpu.pipeline_mode<synchronous>, transform_indices = @transform_3, window_bounds = array<i64: 128, 128>}, {pipeline_mode = #tpu.pipeline_mode<synchronous>, transform_indices = @transform_4, window_bounds = array<i64: 1, 128>}, {pipeline_mode = #tpu.pipeline_mode<synchronous>, transform_indices = @transform_5, window_bounds = array<i64: 128, 128>}, {pipeline_mode = #tpu.pipeline_mode<synchronous>, transform_indices = @transform_6, window_bounds = array<i64: 1, 128>}, {transform_indices = @transform_7, window_bounds = array<i64: 8, 8>}]} {
    %c0 = arith.constant 0 : index
    %c0_0 = arith.constant 0 : index
    %0 = vector.load %arg1[%c0, %c0_0] : memref<8x32xf32, #tpu.memory_space<vmem>>, vector<8x32xf32>
    %c0_1 = arith.constant 0 : index
    %c0_2 = arith.constant 0 : index
    %1 = vector.load %arg2[%c0_1, %c0_2] : memref<32x128xf32, #tpu.memory_space<vmem>>, vector<32x128xf32>
    %c0_3 = arith.constant 0 : index
    %c0_4 = arith.constant 0 : index
    %2 = vector.load %arg3[%c0_3, %c0_4] : memref<1x128xf32, #tpu.memory_space<vmem>>, vector<1x128xf32>
    %cst = arith.constant dense<0.000000e+00> : vector<8x128xf32>
    %3 = tpu.matmul %0, %1, %cst {dimension_numbers = #tpu.dot_dimension_numbers<[1], [0], [0], [1], [0, 0, 1, 1], [], []>} : vector<8x32xf32>, vector<32x128xf32>, vector<8x128xf32> -> vector<8x128xf32>
    %4 = vector.broadcast %2 : vector<1x128xf32> to vector<8x128xf32>
    %5 = arith.addf %3, %4 : vector<8x128xf32>
    %cst_5 = arith.constant 0.000000e+00 : f32
    %6 = vector.broadcast %cst_5 : f32 to vector<8x128xf32>
    %7 = arith.maximumf %5, %6 : vector<8x128xf32>
    %c0_6 = arith.constant 0 : index
    %c0_7 = arith.constant 0 : index
    %8 = vector.load %arg4[%c0_6, %c0_7] : memref<128x128xf32, #tpu.memory_space<vmem>>, vector<128x128xf32>
    %c0_8 = arith.constant 0 : index
    %c0_9 = arith.constant 0 : index
    %9 = vector.load %arg5[%c0_8, %c0_9] : memref<1x128xf32, #tpu.memory_space<vmem>>, vector<1x128xf32>
    %cst_10 = arith.constant dense<0.000000e+00> : vector<8x128xf32>
    %10 = tpu.matmul %7, %8, %cst_10 {dimension_numbers = #tpu.dot_dimension_numbers<[1], [0], [0], [1], [0, 0, 1, 1], [], []>} : vector<8x128xf32>, vector<128x128xf32>, vector<8x128xf32> -> vector<8x128xf32>
    %11 = vector.broadcast %9 : vector<1x128xf32> to vector<8x128xf32>
    %12 = arith.addf %10, %11 : vector<8x128xf32>
    %cst_11 = arith.constant 0.000000e+00 : f32
    %13 = vector.broadcast %cst_11 : f32 to vector<8x128xf32>
    %14 = arith.maximumf %12, %13 : vector<8x128xf32>
    %c0_12 = arith.constant 0 : index
    %c0_13 = arith.constant 0 : index
    %15 = vector.load %arg6[%c0_12, %c0_13] : memref<128x128xf32, #tpu.memory_space<vmem>>, vector<128x128xf32>
    %c0_14 = arith.constant 0 : index
    %c0_15 = arith.constant 0 : index
    %16 = vector.load %arg7[%c0_14, %c0_15] : memref<1x128xf32, #tpu.memory_space<vmem>>, vector<1x128xf32>
    %cst_16 = arith.constant dense<0.000000e+00> : vector<8x128xf32>
    %17 = tpu.matmul %14, %15, %cst_16 {dimension_numbers = #tpu.dot_dimension_numbers<[1], [0], [0], [1], [0, 0, 1, 1], [], []>} : vector<8x128xf32>, vector<128x128xf32>, vector<8x128xf32> -> vector<8x128xf32>
    %18 = vector.broadcast %16 : vector<1x128xf32> to vector<8x128xf32>
    %19 = arith.addf %17, %18 : vector<8x128xf32>
    %cst_17 = arith.constant dense<0xFF800000> : vector<8xf32>
    %20 = vector.multi_reduction <maximumf>, %19, %cst_17 [1] : vector<8x128xf32> to vector<8xf32>
    %21 = vector.shape_cast %20 : vector<8xf32> to vector<8x1xf32>
    %22 = vector.broadcast %21 : vector<8x1xf32> to vector<8x128xf32>
    %23 = arith.subf %19, %22 : vector<8x128xf32>
    %24 = math.exp %23 : vector<8x128xf32>
    %cst_18 = arith.constant dense<0.000000e+00> : vector<8xf32>
    %25 = vector.multi_reduction <add>, %24, %cst_18 [1] : vector<8x128xf32> to vector<8xf32>
    %26 = vector.shape_cast %25 : vector<8xf32> to vector<8x1xf32>
    %27 = tpu.reciprocal %26 {approx = true} : vector<8x1xf32> -> vector<8x1xf32>
    %28 = arith.mulf %26, %27 : vector<8x1xf32>
    %cst_19 = arith.constant 2.000000e+00 : f32
    %29 = vector.broadcast %cst_19 : f32 to vector<8x1xf32>
    %30 = arith.subf %29, %28 : vector<8x1xf32>
    %31 = arith.mulf %27, %30 : vector<8x1xf32>
    %32 = vector.extract_strided_slice %24 {offsets = [0, 0], sizes = [8, 8], strides = [1, 1]} : vector<8x128xf32> to vector<8x8xf32>
    %33 = vector.broadcast %31 : vector<8x1xf32> to vector<8x8xf32>
    %34 = arith.mulf %32, %33 : vector<8x8xf32>
    %c0_20 = arith.constant 0 : index
    %c0_21 = arith.constant 0 : index
    %35 = vector.load %arg8[%c0_20, %c0_21] : memref<8x8xf32, #tpu.memory_space<vmem>>, vector<8x8xf32>
    tpu.vector_store %arg8[%c0_20, %c0_21], %34 {strides = array<i32>} : memref<8x8xf32, #tpu.memory_space<vmem>>, vector<8x8xf32>,
    return
  }
  func.func @transform_0(%arg0: i32) -> (i32, i32) {
    %c0_i32 = arith.constant 0 : i32
    %c0_i32_0 = arith.constant 0 : i32
    return %arg0, %c0_i32 : i32, i32
  }
  func.func @transform_1(%arg0: i32) -> (i32, i32) {
    %c0_i32 = arith.constant 0 : i32
    %c0_i32_0 = arith.constant 0 : i32
    %c0_i32_1 = arith.constant 0 : i32
    return %c0_i32, %c0_i32_0 : i32, i32
  }
  func.func @transform_2(%arg0: i32) -> (i32, i32) {
    %c0_i32 = arith.constant 0 : i32
    %c0_i32_0 = arith.constant 0 : i32
    %c0_i32_1 = arith.constant 0 : i32
    return %c0_i32, %c0_i32_0 : i32, i32
  }
  func.func @transform_3(%arg0: i32) -> (i32, i32) {
    %c0_i32 = arith.constant 0 : i32
    %c0_i32_0 = arith.constant 0 : i32
    %c0_i32_1 = arith.constant 0 : i32
    return %c0_i32, %c0_i32_0 : i32, i32
  }
  func.func @transform_4(%arg0: i32) -> (i32, i32) {
    %c0_i32 = arith.constant 0 : i32
    %c0_i32_0 = arith.constant 0 : i32
    %c0_i32_1 = arith.constant 0 : i32
    return %c0_i32, %c0_i32_0 : i32, i32
  }
  func.func @transform_5(%arg0: i32) -> (i32, i32) {
    %c0_i32 = arith.constant 0 : i32
    %c0_i32_0 = arith.constant 0 : i32
    %c0_i32_1 = arith.constant 0 : i32
    return %c0_i32, %c0_i32_0 : i32, i32
  }
  func.func @transform_6(%arg0: i32) -> (i32, i32) {
    %c0_i32 = arith.constant 0 : i32
    %c0_i32_0 = arith.constant 0 : i32
    %c0_i32_1 = arith.constant 0 : i32
    return %c0_i32, %c0_i32_0 : i32, i32
  }
  func.func @transform_7(%arg0: i32) -> (i32, i32) {
    %c0_i32 = arith.constant 0 : i32
    %c0_i32_0 = arith.constant 0 : i32
    return %arg0, %c0_i32 : i32, i32
  }
}

module attributes {stable_mosaic.version = 11 : i64} {
  func.func @kernel(%arg0: i32, %arg1: memref<8x32xf32, #tpu.memory_space<vmem>>, %arg2: memref<32x128xf32, #tpu.memory_space<vmem>>, %arg3: memref<1x128xf32, #tpu.memory_space<vmem>>, %arg4: memref<128x128xf32, #tpu.memory_space<vmem>>, %arg5: memref<1x128xf32, #tpu.memory_space<vmem>>, %arg6: memref<128x128xf32, #tpu.memory_space<vmem>>, %arg7: memref<1x128xf32, #tpu.memory_space<vmem>>, %arg8: memref<8x8xf32, #tpu.memory_space<vmem>>) attributes {dimension_semantics = [#tpu.dimension_semantics<parallel>], iteration_bounds = array<i64: 1>, scalar_prefetch = 0 : i64, scratch_operands = 0 : i64, tpu.core_type = #tpu.core_type<tc>, window_params = [{transform_indices = @transform_0, window_bounds = array<i64: 8, 32>}, {pipeline_mode = #tpu.pipeline_mode<synchronous>, transform_indices = @transform_1, window_bounds = array<i64: 32, 128>}, {pipeline_mode = #tpu.pipeline_mode<synchronous>, transform_indices = @transform_2, window_bounds = array<i64: 1, 128>}, {pipeline_mode = #tpu.pipeline_mode<synchronous>, transform_indices = @transform_3, window_bounds = array<i64: 128, 128>}, {pipeline_mode = #tpu.pipeline_mode<synchronous>, transform_indices = @transform_4, window_bounds = array<i64: 1, 128>}, {pipeline_mode = #tpu.pipeline_mode<synchronous>, transform_indices = @transform_5, window_bounds = array<i64: 128, 128>}, {pipeline_mode = #tpu.pipeline_mode<synchronous>, transform_indices = @transform_6, window_bounds = array<i64: 1, 128>}, {transform_indices = @transform_7, window_bounds = array<i64: 8, 8>}]} {
    %c0 = arith.constant 0 : index
    %c0_0 = arith.constant 0 : index
    %0 = vector.load %arg1[%c0, %c0_0] : memref<8x32xf32, #tpu.memory_space<vmem>>, vector<8x32xf32>
    %c0_1 = arith.constant 0 : index
    %c0_2 = arith.constant 0 : index
    %1 = vector.load %arg2[%c0_1, %c0_2] : memref<32x128xf32, #tpu.memory_space<vmem>>, vector<32x128xf32>
    %c0_3 = arith.constant 0 : index
    %c0_4 = arith.constant 0 : index
    %2 = vector.load %arg3[%c0_3, %c0_4] : memref<1x128xf32, #tpu.memory_space<vmem>>, vector<1x128xf32>
    %cst = arith.constant dense<0.000000e+00> : vector<8x128xf32>
    %3 = tpu.matmul %0, %1, %cst {dimension_numbers = #tpu.dot_dimension_numbers<[1], [0], [0], [1], [0, 0, 1, 1], [], []>} : vector<8x32xf32>, vector<32x128xf32>, vector<8x128xf32> -> vector<8x128xf32>
    %4 = vector.broadcast %2 : vector<1x128xf32> to vector<8x128xf32>
    %5 = arith.addf %3, %4 : vector<8x128xf32>
    %cst_5 = arith.constant 0.000000e+00 : f32
    %6 = vector.broadcast %cst_5 : f32 to vector<8x128xf32>
    %7 = arith.maximumf %5, %6 : vector<8x128xf32>
    %c0_6 = arith.constant 0 : index
    %c0_7 = arith.constant 0 : index
    %8 = vector.load %arg4[%c0_6, %c0_7] : memref<128x128xf32, #tpu.memory_space<vmem>>, vector<128x128xf32>
    %c0_8 = arith.constant 0 : index
    %c0_9 = arith.constant 0 : index
    %9 = vector.load %arg5[%c0_8, %c0_9] : memref<1x128xf32, #tpu.memory_space<vmem>>, vector<1x128xf32>
    %cst_10 = arith.constant dense<0.000000e+00> : vector<8x128xf32>
    %10 = tpu.matmul %7, %8, %cst_10 {dimension_numbers = #tpu.dot_dimension_numbers<[1], [0], [0], [1], [0, 0, 1, 1], [], []>} : vector<8x128xf32>, vector<128x128xf32>, vector<8x128xf32> -> vector<8x128xf32>
    %11 = vector.broadcast %9 : vector<1x128xf32> to vector<8x128xf32>
    %12 = arith.addf %10, %11 : vector<8x128xf32>
    %cst_11 = arith.constant 0.000000e+00 : f32
    %13 = vector.broadcast %cst_11 : f32 to vector<8x128xf32>
    %14 = arith.maximumf %12, %13 : vector<8x128xf32>
    %c0_12 = arith.constant 0 : index
    %c0_13 = arith.constant 0 : index
    %15 = vector.load %arg6[%c0_12, %c0_13] : memref<128x128xf32, #tpu.memory_space<vmem>>, vector<128x128xf32>
    %c0_14 = arith.constant 0 : index
    %c0_15 = arith.constant 0 : index
    %16 = vector.load %arg7[%c0_14, %c0_15] : memref<1x128xf32, #tpu.memory_space<vmem>>, vector<1x128xf32>
    %cst_16 = arith.constant dense<0.000000e+00> : vector<8x128xf32>
    %17 = tpu.matmul %14, %15, %cst_16 {dimension_numbers = #tpu.dot_dimension_numbers<[1], [0], [0], [1], [0, 0, 1, 1], [], []>} : vector<8x128xf32>, vector<128x128xf32>, vector<8x128xf32> -> vector<8x128xf32>
    %18 = vector.broadcast %16 : vector<1x128xf32> to vector<8x128xf32>
    %19 = arith.addf %17, %18 : vector<8x128xf32>
    %cst_17 = arith.constant dense<0xFF800000> : vector<8xf32>
    %20 = vector.multi_reduction <maximumf>, %19, %cst_17 [1] : vector<8x128xf32> to vector<8xf32>
    %21 = vector.shape_cast %20 : vector<8xf32> to vector<8x1xf32>
    %22 = vector.broadcast %21 : vector<8x1xf32> to vector<8x128xf32>
    %23 = arith.subf %19, %22 : vector<8x128xf32>
    %24 = math.exp %23 : vector<8x128xf32>
    %cst_18 = arith.constant dense<0.000000e+00> : vector<8xf32>
    %25 = vector.multi_reduction <add>, %24, %cst_18 [1] : vector<8x128xf32> to vector<8xf32>
    %26 = vector.shape_cast %25 : vector<8xf32> to vector<8x1xf32>
    %27 = tpu.reciprocal %26 {approx = true} : vector<8x1xf32> -> vector<8x1xf32>
    %28 = arith.mulf %26, %27 : vector<8x1xf32>
    %cst_19 = arith.constant 2.000000e+00 : f32
    %29 = vector.broadcast %cst_19 : f32 to vector<8x1xf32>
    %30 = arith.subf %29, %28 : vector<8x1xf32>
    %31 = arith.mulf %27, %30 : vector<8x1xf32>
    %32 = vector.extract_strided_slice %24 {offsets = [0, 0], sizes = [8, 8], strides = [1, 1]} : vector<8x128xf32> to vector<8x8xf32>
    %33 = vector.broadcast %31 : vector<8x1xf32> to vector<8x8xf32>
    %34 = arith.mulf %32, %33 : vector<8x8xf32>
    %c0_20 = arith.constant 0 : index
    %c0_21 = arith.constant 0 : index
    %35 = vector.load %arg8[%c0_20, %c0_21] : memref<8x8xf32, #tpu.memory_space<vmem>>, vector<8x8xf32>
    tpu.vector_store %arg8[%c0_20, %c0_21], %34 {strides = array<i32>} : memref<8x8xf32, #tpu.memory_space<vmem>>, vector<8x8xf32>,
    return
  }
  func.func @transform_0(%arg0: i32) -> (i32, i32) {
    %c0_i32 = arith.constant 0 : i32
    %c0_i32_0 = arith.constant 0 : i32
    return %arg0, %c0_i32 : i32, i32
  }
  func.func @transform_1(%arg0: i32) -> (i32, i32) {
    %c0_i32 = arith.constant 0 : i32
    %c0_i32_0 = arith.constant 0 : i32
    %c0_i32_1 = arith.constant 0 : i32
    return %c0_i32, %c0_i32_0 : i32, i32
  }
  func.func @transform_2(%arg0: i32) -> (i32, i32) {
    %c0_i32 = arith.constant 0 : i32
    %c0_i32_0 = arith.constant 0 : i32
    %c0_i32_1 = arith.constant 0 : i32
    return %c0_i32, %c0_i32_0 : i32, i32
  }
  func.func @transform_3(%arg0: i32) -> (i32, i32) {
    %c0_i32 = arith.constant 0 : i32
    %c0_i32_0 = arith.constant 0 : i32
    %c0_i32_1 = arith.constant 0 : i32
    return %c0_i32, %c0_i32_0 : i32, i32
  }
  func.func @transform_4(%arg0: i32) -> (i32, i32) {
    %c0_i32 = arith.constant 0 : i32
    %c0_i32_0 = arith.constant 0 : i32
    %c0_i32_1 = arith.constant 0 : i32
    return %c0_i32, %c0_i32_0 : i32, i32
  }
  func.func @transform_5(%arg0: i32) -> (i32, i32) {
    %c0_i32 = arith.constant 0 : i32
    %c0_i32_0 = arith.constant 0 : i32
    %c0_i32_1 = arith.constant 0 : i32
    return %c0_i32, %c0_i32_0 : i32, i32
  }
  func.func @transform_6(%arg0: i32) -> (i32, i32) {
    %c0_i32 = arith.constant 0 : i32
    %c0_i32_0 = arith.constant 0 : i32
    %c0_i32_1 = arith.constant 0 : i32
    return %c0_i32, %c0_i32_0 : i32, i32
  }
  func.func @transform_7(%arg0: i32) -> (i32, i32) {
    %c0_i32 = arith.constant 0 : i32
    %c0_i32_0 = arith.constant 0 : i32
    return %arg0, %c0_i32 : i32, i32
  }
}

</mosaic_0001>

<llo_original>
// kernel: tpu_custom_call.1
$region0: #{tpu_custom_call.1}
  #allocation0 [shape = 'u32[]', space=smem, size = 0x4, offset = 0x4, fixed_abs, tag = 'smem constant byte address 0x4 - core index']
  #allocation1 [shape = 'u32[144,128]{1,0:T(1,128)}', space=vmem, size = 0x12000, scoped, tag = 'internal scratch']
  %s0 = inlined_call_operand.hbm [shape: f32[8,32], index: 0, kind: input, shape index: {}]
  %s1 = inlined_call_operand.hbm [shape: f32[32,128], index: 1, kind: input, shape index: {}]
  %s2 = inlined_call_operand.vmem [shape: f32[1,128], index: 2, kind: input, shape index: {}]
  %s3 = inlined_call_operand.hbm [shape: f32[128,128], index: 3, kind: input, shape index: {}]
  %s4 = inlined_call_operand.vmem [shape: f32[1,128], index: 4, kind: input, shape index: {}]
  %s5 = inlined_call_operand.hbm [shape: f32[128,128], index: 5, kind: input, shape index: {}]
  %s6 = inlined_call_operand.vmem [shape: f32[1,128], index: 6, kind: input, shape index: {}]
  %s7 = inlined_call_operand.hbm [shape: f32[8,8], index: 7, kind: output, shape index: {}]
  %s8 = sld [smem:[#allocation0]]
  $region54: #{tpu_custom_call.1} parent=0
    _
  %s10 = ssub.s32 1, %s8
  %s11 = scalar_select 0, %s10, %s8
  $region1: #{tpu_custom_call.1} parent=0
    #allocation2 [shape = 'u8[4096]{0}', space=vmem, size = 0x1000, scoped, tag = 'input window, operand 0, single buffered']
    #allocation3 [shape = 's32[1]{0}', space=sflag, size = 0x4, scoped, tag = 'scoped memory for tpu_custom_call.1']
    #allocation4 [shape = 's32[1]{0}', space=sflag, size = 0x4, scoped, tag = 'scoped memory for tpu_custom_call.1']
    #allocation5 [shape = 'u8[16384]{0}', space=vmem, size = 0x4000, scoped, tag = 'input window, operand 1, single buffered']
    #allocation6 [shape = 's32[1]{0}', space=sflag, size = 0x4, scoped, tag = 'scoped memory for tpu_custom_call.1']
    #allocation7 [shape = 'u8[65536]{0}', space=vmem, size = 0x10000, scoped, tag = 'input window, operand 3, single buffered']
    #allocation8 [shape = 'u8[65536]{0}', space=vmem, size = 0x10000, scoped, tag = 'input window, operand 5, single buffered']
    #allocation9 [shape = 's32[1]{0}', space=sflag, size = 0x4, scoped, tag = 'scoped memory for tpu_custom_call.1']
    #allocation10 [shape = 'u8[4096]{0}', space=vmem, size = 0x1000, scoped, tag = 'output window, operand 0, single buffered']
    %12 = vsyncpa [#allocation3], 0
    %13 = vsyncpa [#allocation6], 0
    %14 = vsyncpa [#allocation9], 0
    %15 = vsyncpa [#allocation4], 0
    // Predicated region
    $region2: #{tpu_custom_call.1} parent=1 // pred_check
      _
    $region3: #{tpu_custom_call.1} parent=1 // pred_check_branch
      %17 = sbr.rel (0) target = $region5
    $region4: #{tpu_custom_call.1} parent=1 // pred_region
      %s19 = ssub.s32 128, 128
      %20 = vsyncadd [#allocation3], %s19
      %s22 = sshll.u32 [#allocation2], 4
      %s23 = int_to_ptr.vmem [resolvable:$true] %s22
      %25 = dma.hbm_to_vmem [thread:$0]  %s0, 128, %s23, [#allocation3]
    $region5: #{tpu_custom_call.1} parent=1 // pred_fallthru
      _
    // Predicated region
    $region6: #{tpu_custom_call.1} parent=1 // pred_check
      _
    $region7: #{tpu_custom_call.1} parent=1 // pred_check_branch
      %27 = sbr.rel (0) target = $region9
    $region8: #{tpu_custom_call.1} parent=1 // pred_region
      %s29 = ssub.s32 512, 512
      %30 = vsyncadd [#allocation6], %s29
      %s31 = sshll.u32 [#allocation5], 4
      %s32 = int_to_ptr.vmem [resolvable:$true] %s31
      %37 = dma.hbm_to_vmem [thread:$0]  %s1, 512, %s32, [#allocation6], 128, 128, 8
    $region9: #{tpu_custom_call.1} parent=1 // pred_fallthru
      _
    // Predicated region
    $region10: #{tpu_custom_call.1} parent=1 // pred_check
      _
    $region11: #{tpu_custom_call.1} parent=1 // pred_check_branch
      %39 = sbr.rel (0) target = $region13
    $region12: #{tpu_custom_call.1} parent=1 // pred_region
      _
    $region13: #{tpu_custom_call.1} parent=1 // pred_fallthru
      _
    // Predicated region
    $region14: #{tpu_custom_call.1} parent=1 // pred_check
      _
    $region15: #{tpu_custom_call.1} parent=1 // pred_check_branch
      %41 = sbr.rel (0) target = $region17
    $region16: #{tpu_custom_call.1} parent=1 // pred_region
      %s43 = ssub.s32 2048, 2048
      %44 = vsyncadd [#allocation6], %s43
      %s45 = sshll.u32 [#allocation7], 4
      %s46 = int_to_ptr.vmem [resolvable:$true] %s45
      %51 = dma.hbm_to_vmem [thread:$0]  %s3, 2048, %s46, [#allocation6], 128, 128, 8
    $region17: #{tpu_custom_call.1} parent=1 // pred_fallthru
      _
    // Predicated region
    $region18: #{tpu_custom_call.1} parent=1 // pred_check
      _
    $region19: #{tpu_custom_call.1} parent=1 // pred_check_branch
      %53 = sbr.rel (0) target = $region21
    $region20: #{tpu_custom_call.1} parent=1 // pred_region
      _
    $region21: #{tpu_custom_call.1} parent=1 // pred_fallthru
      _
    // Predicated region
    $region22: #{tpu_custom_call.1} parent=1 // pred_check
      _
    $region23: #{tpu_custom_call.1} parent=1 // pred_check_branch
      %55 = sbr.rel (0) target = $region25
    $region24: #{tpu_custom_call.1} parent=1 // pred_region
      %s57 = ssub.s32 2048, 2048
      %58 = vsyncadd [#allocation9], %s57
      %s59 = sshll.u32 [#allocation8], 4
      %s60 = int_to_ptr.vmem [resolvable:$true] %s59
      %65 = dma.hbm_to_vmem [thread:$0]  %s5, 2048, %s60, [#allocation9], 128, 128, 8
    $region25: #{tpu_custom_call.1} parent=1 // pred_fallthru
      _
    // Predicated region
    $region26: #{tpu_custom_call.1} parent=1 // pred_check
      _
    $region27: #{tpu_custom_call.1} parent=1 // pred_check_branch
      %67 = sbr.rel (0) target = $region29
    $region28: #{tpu_custom_call.1} parent=1 // pred_region
      _
    $region29: #{tpu_custom_call.1} parent=1 // pred_fallthru
      _
    // Predicated region
    $region30: #{tpu_custom_call.1} parent=1 // pred_check
      _
    $region31: #{tpu_custom_call.1} parent=1 // pred_check_branch
      %69 = sbr.rel (0) target = $region33
    $region32: #{tpu_custom_call.1} parent=1 // pred_region
      %70 = dma.done [#allocation3], 128
    $region33: #{tpu_custom_call.1} parent=1 // pred_fallthru
      _
    // Predicated region
    $region34: #{tpu_custom_call.1} parent=1 // pred_check
      _
    $region35: #{tpu_custom_call.1} parent=1 // pred_check_branch
      %72 = sbr.rel (0) target = $region37
    $region36: #{tpu_custom_call.1} parent=1 // pred_region
      %73 = dma.done [#allocation6], 512
    $region37: #{tpu_custom_call.1} parent=1 // pred_fallthru
      _
    // Predicated region
    $region38: #{tpu_custom_call.1} parent=1 // pred_check
      _
    $region39: #{tpu_custom_call.1} parent=1 // pred_check_branch
      %75 = sbr.rel (0) target = $region41
    $region40: #{tpu_custom_call.1} parent=1 // pred_region
      %76 = dma.done [#allocation6], 2048
    $region41: #{tpu_custom_call.1} parent=1 // pred_fallthru
      _
    // Predicated region
    $region42: #{tpu_custom_call.1} parent=1 // pred_check
      _
    $region43: #{tpu_custom_call.1} parent=1 // pred_check_branch
      %78 = sbr.rel (0) target = $region45
    $region44: #{tpu_custom_call.1} parent=1 // pred_region
      %79 = dma.done [#allocation9], 2048
    $region45: #{tpu_custom_call.1} parent=1 // pred_fallthru
      _
    %v80 = vld [vmem:[#allocation2] sm:$0xff]
    %v81 = vld [vmem:[#allocation5] sm:$0xff]
    %v82 = vld [vmem:[#allocation5 + $0x8] sm:$0xff]
    %v83 = vld [vmem:[#allocation5 + $0x10] sm:$0xff]
    %v84 = vld [vmem:[#allocation5 + $0x18] sm:$0xff]
    %v85 = vld [vmem:[%s2] sm:$0x1]
    %v87 = vlaneseq
    %v88 = vshrl.u32 %v87, 7
    %v89 = vsub.s32 0, %v88
    %v90 = vrot.slane %v85, %v89
    %vm92 = vcmask 261120
    %v94 = vsel %vm92, %v80, 0
    %96 = vmatprep.subr.mxu0 0.0
    %97 = vmatpush1.msra.mxu0 %v81
    %98 = vmatprep.subr.mxu0 0.0
    %99 = vmatpush1.msra.mxu0 %v82
    %100 = vmatprep.subr.mxu0 0.0
    %101 = vmatpush1.msra.mxu0 %v83
    %102 = vmatprep.subr.mxu0 0.0
    %103 = vmatpush1.msra.mxu0 %v84
    %104 = vmatprep.subr.mxu0 0.0
    %105 = vmatpush1.msra.mxu0 0.0
    %106 = vmatprep.subr.mxu0 0.0
    %107 = vmatpush1.msra.mxu0 0.0
    %108 = vmatprep.subr.mxu0 0.0
    %109 = vmatpush1.msra.mxu0 0.0
    %110 = vmatprep.subr.mxu0 0.0
    %111 = vmatpush1.msra.mxu0 0.0
    %112 = vmatprep.subr.mxu0 0.0
    %113 = vmatpush1.msra.mxu0 0.0
    %114 = vmatprep.subr.mxu0 0.0
    %115 = vmatpush1.msra.mxu0 0.0
    %116 = vmatprep.subr.mxu0 0.0
    %117 = vmatpush1.msra.mxu0 0.0
    %118 = vmatprep.subr.mxu0 0.0
    %119 = vmatpush1.msra.mxu0 0.0
    %120 = vmatprep.subr.mxu0 0.0
    %121 = vmatpush1.msra.mxu0 0.0
    %122 = vmatprep.subr.mxu0 0.0
    %123 = vmatpush1.msra.mxu0 0.0
    %124 = vmatprep.subr.mxu0 0.0
    %125 = vmatpush1.msra.mxu0 0.0
    %126 = vmatprep.subr.mxu0 0.0
    %127 = vmatpush1.msra.mxu0 0.0
    %128 = vmatprep.subr.mxu0 0.0
    %129 = vmatpush1.msra.mxu0 0.0
    %130 = vmatprep.subr.mxu0 0.0
    %131 = vmatpush1.msra.mxu0 0.0
    %132 = vmatprep.subr.mxu0 0.0
    %133 = vmatpush1.msra.mxu0 0.0
    %134 = vmatprep.subr.mxu0 0.0
    %135 = vmatpush1.msra.mxu0 0.0
    %136 = vmatprep.subr.mxu0 0.0
    %137 = vmatpush1.msra.mxu0 0.0
    %138 = vmatprep.subr.mxu0 0.0
    %139 = vmatpush1.msra.mxu0 0.0
    %140 = vmatprep.subr.mxu0 0.0
    %141 = vmatpush1.msra.mxu0 0.0
    %142 = vmatprep.subr.mxu0 0.0
    %143 = vmatpush1.msra.mxu0 0.0
    %144 = vmatprep.subr.mxu0 0.0
    %145 = vmatpush1.msra.mxu0 0.0
    %146 = vmatprep.subr.mxu0 0.0
    %147 = vmatpush1.msra.mxu0 0.0
    %148 = vmatprep.subr.mxu0 0.0
    %149 = vmatpush1.msra.mxu0 0.0
    %150 = vmatprep.subr.mxu0 0.0
    %151 = vmatpush1.msra.mxu0 0.0
    %152 = vmatprep.subr.mxu0 0.0
    %153 = vmatpush1.msra.mxu0 0.0
    %154 = vmatprep.subr.mxu0 0.0
    %155 = vmatpush1.msra.mxu0 0.0
    %156 = vmatprep.subr.mxu0 0.0
    %157 = vmatpush1.msra.mxu0 0.0
    %158 = vmatprep.subr.mxu0 0.0
    %159 = vmatpush1.msra.mxu0 0.0
    %160 = vmatprep.mubr.f32.mxu0 0.0
    %161 = vmatmul.mubr.f32.gmra.mrb[0].mxu0 %v94
    %v162 = vpop.f32.mrb[0].mxu0
    %v163 = vadd.f32 %v90, %v162
    %v164 = vpop.f32.mrb[0].mxu0
    %165 = vdwg.mxu0
    %v166 = vmax.f32 %v163, 0.0
    %v167 = vld [vmem:[#allocation7] sm:$0xff]
    %v168 = vld [vmem:[#allocation7 + $0x8] sm:$0xff]
    %v169 = vld [vmem:[#allocation7 + $0x10] sm:$0xff]
    %v170 = vld [vmem:[#allocation7 + $0x18] sm:$0xff]
    %v171 = vld [vmem:[#allocation7 + $0x20] sm:$0xff]
    %v172 = vld [vmem:[#allocation7 + $0x28] sm:$0xff]
    %v173 = vld [vmem:[#allocation7 + $0x30] sm:$0xff]
    %v174 = vld [vmem:[#allocation7 + $0x38] sm:$0xff]
    %v175 = vld [vmem:[#allocation7 + $0x40] sm:$0xff]
    %v176 = vld [vmem:[#allocation7 + $0x48] sm:$0xff]
    %v177 = vld [vmem:[#allocation7 + $0x50] sm:$0xff]
    %v178 = vld [vmem:[#allocation7 + $0x58] sm:$0xff]
    %v179 = vld [vmem:[#allocation7 + $0x60] sm:$0xff]
    %v180 = vld [vmem:[#allocation7 + $0x68] sm:$0xff]
    %v181 = vld [vmem:[#allocation7 + $0x70] sm:$0xff]
    %v182 = vld [vmem:[#allocation7 + $0x78] sm:$0xff]
    %v183 = vld [vmem:[%s4] sm:$0x1]
    %v185 = vlaneseq
    %v186 = vshrl.u32 %v185, 7
    %v187 = vsub.s32 0, %v186
    %v188 = vrot.slane %v183, %v187
    %190 = vmatprep.subr.mxu0 0.0
    %191 = vmatpush1.msra.mxu0 %v167
    %192 = vmatprep.subr.mxu0 0.0
    %193 = vmatpush1.msra.mxu0 %v168
    %194 = vmatprep.subr.mxu0 0.0
    %195 = vmatpush1.msra.mxu0 %v169
    %196 = vmatprep.subr.mxu0 0.0
    %197 = vmatpush1.msra.mxu0 %v170
    %198 = vmatprep.subr.mxu0 0.0
    %199 = vmatpush1.msra.mxu0 %v171
    %200 = vmatprep.subr.mxu0 0.0
    %201 = vmatpush1.msra.mxu0 %v172
    %202 = vmatprep.subr.mxu0 0.0
    %203 = vmatpush1.msra.mxu0 %v173
    %204 = vmatprep.subr.mxu0 0.0
    %205 = vmatpush1.msra.mxu0 %v174
    %206 = vmatprep.subr.mxu0 0.0
    %207 = vmatpush1.msra.mxu0 %v175
    %208 = vmatprep.subr.mxu0 0.0
    %209 = vmatpush1.msra.mxu0 %v176
    %210 = vmatprep.subr.mxu0 0.0
    %211 = vmatpush1.msra.mxu0 %v177
    %212 = vmatprep.subr.mxu0 0.0
    %213 = vmatpush1.msra.mxu0 %v178
    %214 = vmatprep.subr.mxu0 0.0
    %215 = vmatpush1.msra.mxu0 %v179
    %216 = vmatprep.subr.mxu0 0.0
    %217 = vmatpush1.msra.mxu0 %v180
    %218 = vmatprep.subr.mxu0 0.0
    %219 = vmatpush1.msra.mxu0 %v181
    %220 = vmatprep.subr.mxu0 0.0
    %221 = vmatpush1.msra.mxu0 %v182
    %222 = vmatprep.subr.mxu0 0.0
    %223 = vmatpush1.msra.mxu0 0.0
    %224 = vmatprep.subr.mxu0 0.0
    %225 = vmatpush1.msra.mxu0 0.0
    %226 = vmatprep.subr.mxu0 0.0
    %227 = vmatpush1.msra.mxu0 0.0
    %228 = vmatprep.subr.mxu0 0.0
    %229 = vmatpush1.msra.mxu0 0.0
    %230 = vmatprep.subr.mxu0 0.0
    %231 = vmatpush1.msra.mxu0 0.0
    %232 = vmatprep.subr.mxu0 0.0
    %233 = vmatpush1.msra.mxu0 0.0
    %234 = vmatprep.subr.mxu0 0.0
    %235 = vmatpush1.msra.mxu0 0.0
    %236 = vmatprep.subr.mxu0 0.0
    %237 = vmatpush1.msra.mxu0 0.0
    %238 = vmatprep.subr.mxu0 0.0
    %239 = vmatpush1.msra.mxu0 0.0
    %240 = vmatprep.subr.mxu0 0.0
    %241 = vmatpush1.msra.mxu0 0.0
    %242 = vmatprep.subr.mxu0 0.0
    %243 = vmatpush1.msra.mxu0 0.0
    %244 = vmatprep.subr.mxu0 0.0
    %245 = vmatpush1.msra.mxu0 0.0
    %246 = vmatprep.subr.mxu0 0.0
    %247 = vmatpush1.msra.mxu0 0.0
    %248 = vmatprep.subr.mxu0 0.0
    %249 = vmatpush1.msra.mxu0 0.0
    %250 = vmatprep.subr.mxu0 0.0
    %251 = vmatpush1.msra.mxu0 0.0
    %252 = vmatprep.subr.mxu0 0.0
    %253 = vmatpush1.msra.mxu0 0.0
    %254 = vmatprep.mubr.f32.mxu0 0.0
    %255 = vmatmul.mubr.f32.gmra.mrb[0].mxu0 %v166
    %v256 = vpop.f32.mrb[0].mxu0
    %v257 = vadd.f32 %v188, %v256
    %v258 = vpop.f32.mrb[0].mxu0
    %259 = vdwg.mxu0
    %v260 = vmax.f32 %v257, 0.0
    %v261 = vld [vmem:[#allocation8] sm:$0xff]
    %v262 = vld [vmem:[#allocation8 + $0x8] sm:$0xff]
    %v263 = vld [vmem:[#allocation8 + $0x10] sm:$0xff]
    %v264 = vld [vmem:[#allocation8 + $0x18] sm:$0xff]
    %v265 = vld [vmem:[#allocation8 + $0x20] sm:$0xff]
    %v266 = vld [vmem:[#allocation8 + $0x28] sm:$0xff]
    %v267 = vld [vmem:[#allocation8 + $0x30] sm:$0xff]
    %v268 = vld [vmem:[#allocation8 + $0x38] sm:$0xff]
    %v269 = vld [vmem:[#allocation8 + $0x40] sm:$0xff]
    %v270 = vld [vmem:[#allocation8 + $0x48] sm:$0xff]
    %v271 = vld [vmem:[#allocation8 + $0x50] sm:$0xff]
    %v272 = vld [vmem:[#allocation8 + $0x58] sm:$0xff]
    %v273 = vld [vmem:[#allocation8 + $0x60] sm:$0xff]
    %v274 = vld [vmem:[#allocation8 + $0x68] sm:$0xff]
    %v275 = vld [vmem:[#allocation8 + $0x70] sm:$0xff]
    %v276 = vld [vmem:[#allocation8 + $0x78] sm:$0xff]
    %v277 = vld [vmem:[%s6] sm:$0x1]
    %v279 = vlaneseq
    %v280 = vshrl.u32 %v279, 7
    %v281 = vsub.s32 0, %v280
    %v282 = vrot.slane %v277, %v281
    %284 = vmatprep.subr.mxu0 0.0
    %285 = vmatpush1.msra.mxu0 %v261
    %286 = vmatprep.subr.mxu0 0.0
    %287 = vmatpush1.msra.mxu0 %v262
    %288 = vmatprep.subr.mxu0 0.0
    %289 = vmatpush1.msra.mxu0 %v263
    %290 = vmatprep.subr.mxu0 0.0
    %291 = vmatpush1.msra.mxu0 %v264
    %292 = vmatprep.subr.mxu0 0.0
    %293 = vmatpush1.msra.mxu0 %v265
    %294 = vmatprep.subr.mxu0 0.0
    %295 = vmatpush1.msra.mxu0 %v266
    %296 = vmatprep.subr.mxu0 0.0
    %297 = vmatpush1.msra.mxu0 %v267
    %298 = vmatprep.subr.mxu0 0.0
    %299 = vmatpush1.msra.mxu0 %v268
    %300 = vmatprep.subr.mxu0 0.0
    %301 = vmatpush1.msra.mxu0 %v269
    %302 = vmatprep.subr.mxu0 0.0
    %303 = vmatpush1.msra.mxu0 %v270
    %304 = vmatprep.subr.mxu0 0.0
    %305 = vmatpush1.msra.mxu0 %v271
    %306 = vmatprep.subr.mxu0 0.0
    %307 = vmatpush1.msra.mxu0 %v272
    %308 = vmatprep.subr.mxu0 0.0
    %309 = vmatpush1.msra.mxu0 %v273
    %310 = vmatprep.subr.mxu0 0.0
    %311 = vmatpush1.msra.mxu0 %v274
    %312 = vmatprep.subr.mxu0 0.0
    %313 = vmatpush1.msra.mxu0 %v275
    %314 = vmatprep.subr.mxu0 0.0
    %315 = vmatpush1.msra.mxu0 %v276
    %316 = vmatprep.subr.mxu0 0.0
    %317 = vmatpush1.msra.mxu0 0.0
    %318 = vmatprep.subr.mxu0 0.0
    %319 = vmatpush1.msra.mxu0 0.0
    %320 = vmatprep.subr.mxu0 0.0
    %321 = vmatpush1.msra.mxu0 0.0
    %322 = vmatprep.subr.mxu0 0.0
    %323 = vmatpush1.msra.mxu0 0.0
    %324 = vmatprep.subr.mxu0 0.0
    %325 = vmatpush1.msra.mxu0 0.0
    %326 = vmatprep.subr.mxu0 0.0
    %327 = vmatpush1.msra.mxu0 0.0
    %328 = vmatprep.subr.mxu0 0.0
    %329 = vmatpush1.msra.mxu0 0.0
    %330 = vmatprep.subr.mxu0 0.0
    %331 = vmatpush1.msra.mxu0 0.0
    %332 = vmatprep.subr.mxu0 0.0
    %333 = vmatpush1.msra.mxu0 0.0
    %334 = vmatprep.subr.mxu0 0.0
    %335 = vmatpush1.msra.mxu0 0.0
    %336 = vmatprep.subr.mxu0 0.0
    %337 = vmatpush1.msra.mxu0 0.0
    %338 = vmatprep.subr.mxu0 0.0
    %339 = vmatpush1.msra.mxu0 0.0
    %340 = vmatprep.subr.mxu0 0.0
    %341 = vmatpush1.msra.mxu0 0.0
    %342 = vmatprep.subr.mxu0 0.0
    %343 = vmatpush1.msra.mxu0 0.0
    %344 = vmatprep.subr.mxu0 0.0
    %345 = vmatpush1.msra.mxu0 0.0
    %346 = vmatprep.subr.mxu0 0.0
    %347 = vmatpush1.msra.mxu0 0.0
    %348 = vmatprep.mubr.f32.mxu0 0.0
    %349 = vmatmul.mubr.f32.gmra.mrb[0].mxu0 %v260
    %v350 = vpop.f32.mrb[0].mxu0
    %v351 = vadd.f32 %v282, %v350
    %v352 = vpop.f32.mrb[0].mxu0
    %353 = vdwg.mxu0
    %354 = vmax.xlane.f32.xlu0 %v351
    %v355 = vpop.xlane.xlu0 %354
    %v356 = vsub.f32 %v351, %v355
    %v357 = vmul.f32 %v356, 1.442695
    %v358 = vpow.pop %v357
    %359 = vadd.xlane.f32.xlu0 %v358
    %v360 = vpop.xlane.xlu0 %359
    %v361 = vrcp.pop %v360
    %v362 = vmul.f32 %v360, %v361
    %v363 = vsub.f32 2.0, %v362
    %v364 = vmul.f32 %v361, %v363
    %v365 = vmul.f32 %v358, %v364
    %vm366 = vcmask 64512
    %367 = vst.msk [vmem:[#allocation10] sm:$0xff] %vm366, %v365
    // Predicated region
    $region46: #{tpu_custom_call.1} parent=1 // pred_check
      _
    $region47: #{tpu_custom_call.1} parent=1 // pred_check_branch
      %369 = sbr.rel (0) target = $region49
    $region48: #{tpu_custom_call.1} parent=1 // pred_region
      %s371 = ssub.s32 128, 128
      %372 = vsyncadd [#allocation4], %s371
      %s374 = sshll.u32 [#allocation10], 4
      %s375 = int_to_ptr.vmem [resolvable:$true] %s374
      %377 = dma.vmem_to_hbm [thread:$0]  %s375, 128, %s7, [#allocation4]
    $region49: #{tpu_custom_call.1} parent=1 // pred_fallthru
      _
    // Predicated region
    $region50: #{tpu_custom_call.1} parent=1 // pred_check
      _
    $region51: #{tpu_custom_call.1} parent=1 // pred_check_branch
      %379 = sbr.rel (0) target = $region53
    $region52: #{tpu_custom_call.1} parent=1 // pred_region
      %380 = dma.done [#allocation4], 128
    $region53: #{tpu_custom_call.1} parent=1 // pred_fallthru
      _
    %381 = vsyncpa [#allocation3], 1
    %382 = vsyncpa [#allocation6], 1
    %383 = vsyncpa [#allocation9], 1
    %384 = vsyncpa [#allocation4], 1

// kernel: tpu_custom_call.1
$region0: #{tpu_custom_call.1}
  #allocation0 [shape = 'u32[]', space=smem, size = 0x4, offset = 0x4, fixed_abs, tag = 'smem constant byte address 0x4 - core index']
  #allocation1 [shape = 'u32[144,128]{1,0:T(1,128)}', space=vmem, size = 0x12000, scoped, tag = 'internal scratch']
  %s0 = inlined_call_operand.hbm [shape: f32[8,32], index: 0, kind: input, shape index: {}]
  %s1 = inlined_call_operand.hbm [shape: f32[32,128], index: 1, kind: input, shape index: {}]
  %s2 = inlined_call_operand.vmem [shape: f32[1,128], index: 2, kind: input, shape index: {}]
  %s3 = inlined_call_operand.hbm [shape: f32[128,128], index: 3, kind: input, shape index: {}]
  %s4 = inlined_call_operand.vmem [shape: f32[1,128], index: 4, kind: input, shape index: {}]
  %s5 = inlined_call_operand.hbm [shape: f32[128,128], index: 5, kind: input, shape index: {}]
  %s6 = inlined_call_operand.vmem [shape: f32[1,128], index: 6, kind: input, shape index: {}]
  %s7 = inlined_call_operand.hbm [shape: f32[8,8], index: 7, kind: output, shape index: {}]
  %s8 = sld [smem:[#allocation0]]
  $region54: #{tpu_custom_call.1} parent=0
    _
  %s10 = ssub.s32 1, %s8
  %s11 = scalar_select 0, %s10, %s8
  $region1: #{tpu_custom_call.1} parent=0
    #allocation2 [shape = 'u8[4096]{0}', space=vmem, size = 0x1000, scoped, tag = 'input window, operand 0, single buffered']
    #allocation3 [shape = 's32[1]{0}', space=sflag, size = 0x4, scoped, tag = 'scoped memory for tpu_custom_call.1']
    #allocation4 [shape = 's32[1]{0}', space=sflag, size = 0x4, scoped, tag = 'scoped memory for tpu_custom_call.1']
    #allocation5 [shape = 'u8[16384]{0}', space=vmem, size = 0x4000, scoped, tag = 'input window, operand 1, single buffered']
    #allocation6 [shape = 's32[1]{0}', space=sflag, size = 0x4, scoped, tag = 'scoped memory for tpu_custom_call.1']
    #allocation7 [shape = 'u8[65536]{0}', space=vmem, size = 0x10000, scoped, tag = 'input window, operand 3, single buffered']
    #allocation8 [shape = 'u8[65536]{0}', space=vmem, size = 0x10000, scoped, tag = 'input window, operand 5, single buffered']
    #allocation9 [shape = 's32[1]{0}', space=sflag, size = 0x4, scoped, tag = 'scoped memory for tpu_custom_call.1']
    #allocation10 [shape = 'u8[4096]{0}', space=vmem, size = 0x1000, scoped, tag = 'output window, operand 0, single buffered']
    %12 = vsyncpa [#allocation3], 0
    %13 = vsyncpa [#allocation6], 0
    %14 = vsyncpa [#allocation9], 0
    %15 = vsyncpa [#allocation4], 0
    // Predicated region
    $region2: #{tpu_custom_call.1} parent=1 // pred_check
      _
    $region3: #{tpu_custom_call.1} parent=1 // pred_check_branch
      %17 = sbr.rel (0) target = $region5
    $region4: #{tpu_custom_call.1} parent=1 // pred_region
      %s19 = ssub.s32 128, 128
      %20 = vsyncadd [#allocation3], %s19
      %s22 = sshll.u32 [#allocation2], 4
      %s23 = int_to_ptr.vmem [resolvable:$true] %s22
      %25 = dma.hbm_to_vmem [thread:$0]  %s0, 128, %s23, [#allocation3]
    $region5: #{tpu_custom_call.1} parent=1 // pred_fallthru
      _
    // Predicated region
    $region6: #{tpu_custom_call.1} parent=1 // pred_check
      _
    $region7: #{tpu_custom_call.1} parent=1 // pred_check_branch
      %27 = sbr.rel (0) target = $region9
    $region8: #{tpu_custom_call.1} parent=1 // pred_region
      %s29 = ssub.s32 512, 512
      %30 = vsyncadd [#allocation6], %s29
      %s31 = sshll.u32 [#allocation5], 4
      %s32 = int_to_ptr.vmem [resolvable:$true] %s31
      %37 = dma.hbm_to_vmem [thread:$0]  %s1, 512, %s32, [#allocation6], 128, 128, 8
    $region9: #{tpu_custom_call.1} parent=1 // pred_fallthru
      _
    // Predicated region
    $region10: #{tpu_custom_call.1} parent=1 // pred_check
      _
    $region11: #{tpu_custom_call.1} parent=1 // pred_check_branch
      %39 = sbr.rel (0) target = $region13
    $region12: #{tpu_custom_call.1} parent=1 // pred_region
      _
    $region13: #{tpu_custom_call.1} parent=1 // pred_fallthru
      _
    // Predicated region
    $region14: #{tpu_custom_call.1} parent=1 // pred_check
      _
    $region15: #{tpu_custom_call.1} parent=1 // pred_check_branch
      %41 = sbr.rel (0) target = $region17
    $region16: #{tpu_custom_call.1} parent=1 // pred_region
      %s43 = ssub.s32 2048, 2048
      %44 = vsyncadd [#allocation6], %s43
      %s45 = sshll.u32 [#allocation7], 4
      %s46 = int_to_ptr.vmem [resolvable:$true] %s45
      %51 = dma.hbm_to_vmem [thread:$0]  %s3, 2048, %s46, [#allocation6], 128, 128, 8
    $region17: #{tpu_custom_call.1} parent=1 // pred_fallthru
      _
    // Predicated region
    $region18: #{tpu_custom_call.1} parent=1 // pred_check
      _
    $region19: #{tpu_custom_call.1} parent=1 // pred_check_branch
      %53 = sbr.rel (0) target = $region21
    $region20: #{tpu_custom_call.1} parent=1 // pred_region
      _
    $region21: #{tpu_custom_call.1} parent=1 // pred_fallthru
      _
    // Predicated region
    $region22: #{tpu_custom_call.1} parent=1 // pred_check
      _
    $region23: #{tpu_custom_call.1} parent=1 // pred_check_branch
      %55 = sbr.rel (0) target = $region25
    $region24: #{tpu_custom_call.1} parent=1 // pred_region
      %s57 = ssub.s32 2048, 2048
      %58 = vsyncadd [#allocation9], %s57
      %s59 = sshll.u32 [#allocation8], 4
      %s60 = int_to_ptr.vmem [resolvable:$true] %s59
      %65 = dma.hbm_to_vmem [thread:$0]  %s5, 2048, %s60, [#allocation9], 128, 128, 8
    $region25: #{tpu_custom_call.1} parent=1 // pred_fallthru
      _
    // Predicated region
    $region26: #{tpu_custom_call.1} parent=1 // pred_check
      _
    $region27: #{tpu_custom_call.1} parent=1 // pred_check_branch
      %67 = sbr.rel (0) target = $region29
    $region28: #{tpu_custom_call.1} parent=1 // pred_region
      _
    $region29: #{tpu_custom_call.1} parent=1 // pred_fallthru
      _
    // Predicated region
    $region30: #{tpu_custom_call.1} parent=1 // pred_check
      _
    $region31: #{tpu_custom_call.1} parent=1 // pred_check_branch
      %69 = sbr.rel (0) target = $region33
    $region32: #{tpu_custom_call.1} parent=1 // pred_region
      %70 = dma.done [#allocation3], 128
    $region33: #{tpu_custom_call.1} parent=1 // pred_fallthru
      _
    // Predicated region
    $region34: #{tpu_custom_call.1} parent=1 // pred_check
      _
    $region35: #{tpu_custom_call.1} parent=1 // pred_check_branch
      %72 = sbr.rel (0) target = $region37
    $region36: #{tpu_custom_call.1} parent=1 // pred_region
      %73 = dma.done [#allocation6], 512
    $region37: #{tpu_custom_call.1} parent=1 // pred_fallthru
      _
    // Predicated region
    $region38: #{tpu_custom_call.1} parent=1 // pred_check
      _
    $region39: #{tpu_custom_call.1} parent=1 // pred_check_branch
      %75 = sbr.rel (0) target = $region41
    $region40: #{tpu_custom_call.1} parent=1 // pred_region
      %76 = dma.done [#allocation6], 2048
    $region41: #{tpu_custom_call.1} parent=1 // pred_fallthru
      _
    // Predicated region
    $region42: #{tpu_custom_call.1} parent=1 // pred_check
      _
    $region43: #{tpu_custom_call.1} parent=1 // pred_check_branch
      %78 = sbr.rel (0) target = $region45
    $region44: #{tpu_custom_call.1} parent=1 // pred_region
      %79 = dma.done [#allocation9], 2048
    $region45: #{tpu_custom_call.1} parent=1 // pred_fallthru
      _
    %v80 = vld [vmem:[#allocation2] sm:$0xff]
    %v81 = vld [vmem:[#allocation5] sm:$0xff]
    %v82 = vld [vmem:[#allocation5 + $0x8] sm:$0xff]
    %v83 = vld [vmem:[#allocation5 + $0x10] sm:$0xff]
    %v84 = vld [vmem:[#allocation5 + $0x18] sm:$0xff]
    %v85 = vld [vmem:[%s2] sm:$0x1]
    %v87 = vlaneseq
    %v88 = vshrl.u32 %v87, 7
    %v89 = vsub.s32 0, %v88
    %v90 = vrot.slane %v85, %v89
    %vm92 = vcmask 261120
    %v94 = vsel %vm92, %v80, 0
    %96 = vmatprep.subr.mxu0 0.0
    %97 = vmatpush1.msra.mxu0 %v81
    %98 = vmatprep.subr.mxu0 0.0
    %99 = vmatpush1.msra.mxu0 %v82
    %100 = vmatprep.subr.mxu0 0.0
    %101 = vmatpush1.msra.mxu0 %v83
    %102 = vmatprep.subr.mxu0 0.0
    %103 = vmatpush1.msra.mxu0 %v84
    %104 = vmatprep.subr.mxu0 0.0
    %105 = vmatpush1.msra.mxu0 0.0
    %106 = vmatprep.subr.mxu0 0.0
    %107 = vmatpush1.msra.mxu0 0.0
    %108 = vmatprep.subr.mxu0 0.0
    %109 = vmatpush1.msra.mxu0 0.0
    %110 = vmatprep.subr.mxu0 0.0
    %111 = vmatpush1.msra.mxu0 0.0
    %112 = vmatprep.subr.mxu0 0.0
    %113 = vmatpush1.msra.mxu0 0.0
    %114 = vmatprep.subr.mxu0 0.0
    %115 = vmatpush1.msra.mxu0 0.0
    %116 = vmatprep.subr.mxu0 0.0
    %117 = vmatpush1.msra.mxu0 0.0
    %118 = vmatprep.subr.mxu0 0.0
    %119 = vmatpush1.msra.mxu0 0.0
    %120 = vmatprep.subr.mxu0 0.0
    %121 = vmatpush1.msra.mxu0 0.0
    %122 = vmatprep.subr.mxu0 0.0
    %123 = vmatpush1.msra.mxu0 0.0
    %124 = vmatprep.subr.mxu0 0.0
    %125 = vmatpush1.msra.mxu0 0.0
    %126 = vmatprep.subr.mxu0 0.0
    %127 = vmatpush1.msra.mxu0 0.0
    %128 = vmatprep.subr.mxu0 0.0
    %129 = vmatpush1.msra.mxu0 0.0
    %130 = vmatprep.subr.mxu0 0.0
    %131 = vmatpush1.msra.mxu0 0.0
    %132 = vmatprep.subr.mxu0 0.0
    %133 = vmatpush1.msra.mxu0 0.0
    %134 = vmatprep.subr.mxu0 0.0
    %135 = vmatpush1.msra.mxu0 0.0
    %136 = vmatprep.subr.mxu0 0.0
    %137 = vmatpush1.msra.mxu0 0.0
    %138 = vmatprep.subr.mxu0 0.0
    %139 = vmatpush1.msra.mxu0 0.0
    %140 = vmatprep.subr.mxu0 0.0
    %141 = vmatpush1.msra.mxu0 0.0
    %142 = vmatprep.subr.mxu0 0.0
    %143 = vmatpush1.msra.mxu0 0.0
    %144 = vmatprep.subr.mxu0 0.0
    %145 = vmatpush1.msra.mxu0 0.0
    %146 = vmatprep.subr.mxu0 0.0
    %147 = vmatpush1.msra.mxu0 0.0
    %148 = vmatprep.subr.mxu0 0.0
    %149 = vmatpush1.msra.mxu0 0.0
    %150 = vmatprep.subr.mxu0 0.0
    %151 = vmatpush1.msra.mxu0 0.0
    %152 = vmatprep.subr.mxu0 0.0
    %153 = vmatpush1.msra.mxu0 0.0
    %154 = vmatprep.subr.mxu0 0.0
    %155 = vmatpush1.msra.mxu0 0.0
    %156 = vmatprep.subr.mxu0 0.0
    %157 = vmatpush1.msra.mxu0 0.0
    %158 = vmatprep.subr.mxu0 0.0
    %159 = vmatpush1.msra.mxu0 0.0
    %160 = vmatprep.mubr.f32.mxu0 0.0
    %161 = vmatmul.mubr.f32.gmra.mrb[0].mxu0 %v94
    %v162 = vpop.f32.mrb[0].mxu0
    %v163 = vadd.f32 %v90, %v162
    %v164 = vpop.f32.mrb[0].mxu0
    %165 = vdwg.mxu0
    %v166 = vmax.f32 %v163, 0.0
    %v167 = vld [vmem:[#allocation7] sm:$0xff]
    %v168 = vld [vmem:[#allocation7 + $0x8] sm:$0xff]
    %v169 = vld [vmem:[#allocation7 + $0x10] sm:$0xff]
    %v170 = vld [vmem:[#allocation7 + $0x18] sm:$0xff]
    %v171 = vld [vmem:[#allocation7 + $0x20] sm:$0xff]
    %v172 = vld [vmem:[#allocation7 + $0x28] sm:$0xff]
    %v173 = vld [vmem:[#allocation7 + $0x30] sm:$0xff]
    %v174 = vld [vmem:[#allocation7 + $0x38] sm:$0xff]
    %v175 = vld [vmem:[#allocation7 + $0x40] sm:$0xff]
    %v176 = vld [vmem:[#allocation7 + $0x48] sm:$0xff]
    %v177 = vld [vmem:[#allocation7 + $0x50] sm:$0xff]
    %v178 = vld [vmem:[#allocation7 + $0x58] sm:$0xff]
    %v179 = vld [vmem:[#allocation7 + $0x60] sm:$0xff]
    %v180 = vld [vmem:[#allocation7 + $0x68] sm:$0xff]
    %v181 = vld [vmem:[#allocation7 + $0x70] sm:$0xff]
    %v182 = vld [vmem:[#allocation7 + $0x78] sm:$0xff]
    %v183 = vld [vmem:[%s4] sm:$0x1]
    %v185 = vlaneseq
    %v186 = vshrl.u32 %v185, 7
    %v187 = vsub.s32 0, %v186
    %v188 = vrot.slane %v183, %v187
    %190 = vmatprep.subr.mxu0 0.0
    %191 = vmatpush1.msra.mxu0 %v167
    %192 = vmatprep.subr.mxu0 0.0
    %193 = vmatpush1.msra.mxu0 %v168
    %194 = vmatprep.subr.mxu0 0.0
    %195 = vmatpush1.msra.mxu0 %v169
    %196 = vmatprep.subr.mxu0 0.0
    %197 = vmatpush1.msra.mxu0 %v170
    %198 = vmatprep.subr.mxu0 0.0
    %199 = vmatpush1.msra.mxu0 %v171
    %200 = vmatprep.subr.mxu0 0.0
    %201 = vmatpush1.msra.mxu0 %v172
    %202 = vmatprep.subr.mxu0 0.0
    %203 = vmatpush1.msra.mxu0 %v173
    %204 = vmatprep.subr.mxu0 0.0
    %205 = vmatpush1.msra.mxu0 %v174
    %206 = vmatprep.subr.mxu0 0.0
    %207 = vmatpush1.msra.mxu0 %v175
    %208 = vmatprep.subr.mxu0 0.0
    %209 = vmatpush1.msra.mxu0 %v176
    %210 = vmatprep.subr.mxu0 0.0
    %211 = vmatpush1.msra.mxu0 %v177
    %212 = vmatprep.subr.mxu0 0.0
    %213 = vmatpush1.msra.mxu0 %v178
    %214 = vmatprep.subr.mxu0 0.0
    %215 = vmatpush1.msra.mxu0 %v179
    %216 = vmatprep.subr.mxu0 0.0
    %217 = vmatpush1.msra.mxu0 %v180
    %218 = vmatprep.subr.mxu0 0.0
    %219 = vmatpush1.msra.mxu0 %v181
    %220 = vmatprep.subr.mxu0 0.0
    %221 = vmatpush1.msra.mxu0 %v182
    %222 = vmatprep.subr.mxu0 0.0
    %223 = vmatpush1.msra.mxu0 0.0
    %224 = vmatprep.subr.mxu0 0.0
    %225 = vmatpush1.msra.mxu0 0.0
    %226 = vmatprep.subr.mxu0 0.0
    %227 = vmatpush1.msra.mxu0 0.0
    %228 = vmatprep.subr.mxu0 0.0
    %229 = vmatpush1.msra.mxu0 0.0
    %230 = vmatprep.subr.mxu0 0.0
    %231 = vmatpush1.msra.mxu0 0.0
    %232 = vmatprep.subr.mxu0 0.0
    %233 = vmatpush1.msra.mxu0 0.0
    %234 = vmatprep.subr.mxu0 0.0
    %235 = vmatpush1.msra.mxu0 0.0
    %236 = vmatprep.subr.mxu0 0.0
    %237 = vmatpush1.msra.mxu0 0.0
    %238 = vmatprep.subr.mxu0 0.0
    %239 = vmatpush1.msra.mxu0 0.0
    %240 = vmatprep.subr.mxu0 0.0
    %241 = vmatpush1.msra.mxu0 0.0
    %242 = vmatprep.subr.mxu0 0.0
    %243 = vmatpush1.msra.mxu0 0.0
    %244 = vmatprep.subr.mxu0 0.0
    %245 = vmatpush1.msra.mxu0 0.0
    %246 = vmatprep.subr.mxu0 0.0
    %247 = vmatpush1.msra.mxu0 0.0
    %248 = vmatprep.subr.mxu0 0.0
    %249 = vmatpush1.msra.mxu0 0.0
    %250 = vmatprep.subr.mxu0 0.0
    %251 = vmatpush1.msra.mxu0 0.0
    %252 = vmatprep.subr.mxu0 0.0
    %253 = vmatpush1.msra.mxu0 0.0
    %254 = vmatprep.mubr.f32.mxu0 0.0
    %255 = vmatmul.mubr.f32.gmra.mrb[0].mxu0 %v166
    %v256 = vpop.f32.mrb[0].mxu0
    %v257 = vadd.f32 %v188, %v256
    %v258 = vpop.f32.mrb[0].mxu0
    %259 = vdwg.mxu0
    %v260 = vmax.f32 %v257, 0.0
    %v261 = vld [vmem:[#allocation8] sm:$0xff]
    %v262 = vld [vmem:[#allocation8 + $0x8] sm:$0xff]
    %v263 = vld [vmem:[#allocation8 + $0x10] sm:$0xff]
    %v264 = vld [vmem:[#allocation8 + $0x18] sm:$0xff]
    %v265 = vld [vmem:[#allocation8 + $0x20] sm:$0xff]
    %v266 = vld [vmem:[#allocation8 + $0x28] sm:$0xff]
    %v267 = vld [vmem:[#allocation8 + $0x30] sm:$0xff]
    %v268 = vld [vmem:[#allocation8 + $0x38] sm:$0xff]
    %v269 = vld [vmem:[#allocation8 + $0x40] sm:$0xff]
    %v270 = vld [vmem:[#allocation8 + $0x48] sm:$0xff]
    %v271 = vld [vmem:[#allocation8 + $0x50] sm:$0xff]
    %v272 = vld [vmem:[#allocation8 + $0x58] sm:$0xff]
    %v273 = vld [vmem:[#allocation8 + $0x60] sm:$0xff]
    %v274 = vld [vmem:[#allocation8 + $0x68] sm:$0xff]
    %v275 = vld [vmem:[#allocation8 + $0x70] sm:$0xff]
    %v276 = vld [vmem:[#allocation8 + $0x78] sm:$0xff]
    %v277 = vld [vmem:[%s6] sm:$0x1]
    %v279 = vlaneseq
    %v280 = vshrl.u32 %v279, 7
    %v281 = vsub.s32 0, %v280
    %v282 = vrot.slane %v277, %v281
    %284 = vmatprep.subr.mxu0 0.0
    %285 = vmatpush1.msra.mxu0 %v261
    %286 = vmatprep.subr.mxu0 0.0
    %287 = vmatpush1.msra.mxu0 %v262
    %288 = vmatprep.subr.mxu0 0.0
    %289 = vmatpush1.msra.mxu0 %v263
    %290 = vmatprep.subr.mxu0 0.0
    %291 = vmatpush1.msra.mxu0 %v264
    %292 = vmatprep.subr.mxu0 0.0
    %293 = vmatpush1.msra.mxu0 %v265
    %294 = vmatprep.subr.mxu0 0.0
    %295 = vmatpush1.msra.mxu0 %v266
    %296 = vmatprep.subr.mxu0 0.0
    %297 = vmatpush1.msra.mxu0 %v267
    %298 = vmatprep.subr.mxu0 0.0
    %299 = vmatpush1.msra.mxu0 %v268
    %300 = vmatprep.subr.mxu0 0.0
    %301 = vmatpush1.msra.mxu0 %v269
    %302 = vmatprep.subr.mxu0 0.0
    %303 = vmatpush1.msra.mxu0 %v270
    %304 = vmatprep.subr.mxu0 0.0
    %305 = vmatpush1.msra.mxu0 %v271
    %306 = vmatprep.subr.mxu0 0.0
    %307 = vmatpush1.msra.mxu0 %v272
    %308 = vmatprep.subr.mxu0 0.0
    %309 = vmatpush1.msra.mxu0 %v273
    %310 = vmatprep.subr.mxu0 0.0
    %311 = vmatpush1.msra.mxu0 %v274
    %312 = vmatprep.subr.mxu0 0.0
    %313 = vmatpush1.msra.mxu0 %v275
    %314 = vmatprep.subr.mxu0 0.0
    %315 = vmatpush1.msra.mxu0 %v276
    %316 = vmatprep.subr.mxu0 0.0
    %317 = vmatpush1.msra.mxu0 0.0
    %318 = vmatprep.subr.mxu0 0.0
    %319 = vmatpush1.msra.mxu0 0.0
    %320 = vmatprep.subr.mxu0 0.0
    %321 = vmatpush1.msra.mxu0 0.0
    %322 = vmatprep.subr.mxu0 0.0
    %323 = vmatpush1.msra.mxu0 0.0
    %324 = vmatprep.subr.mxu0 0.0
    %325 = vmatpush1.msra.mxu0 0.0
    %326 = vmatprep.subr.mxu0 0.0
    %327 = vmatpush1.msra.mxu0 0.0
    %328 = vmatprep.subr.mxu0 0.0
    %329 = vmatpush1.msra.mxu0 0.0
    %330 = vmatprep.subr.mxu0 0.0
    %331 = vmatpush1.msra.mxu0 0.0
    %332 = vmatprep.subr.mxu0 0.0
    %333 = vmatpush1.msra.mxu0 0.0
    %334 = vmatprep.subr.mxu0 0.0
    %335 = vmatpush1.msra.mxu0 0.0
    %336 = vmatprep.subr.mxu0 0.0
    %337 = vmatpush1.msra.mxu0 0.0
    %338 = vmatprep.subr.mxu0 0.0
    %339 = vmatpush1.msra.mxu0 0.0
    %340 = vmatprep.subr.mxu0 0.0
    %341 = vmatpush1.msra.mxu0 0.0
    %342 = vmatprep.subr.mxu0 0.0
    %343 = vmatpush1.msra.mxu0 0.0
    %344 = vmatprep.subr.mxu0 0.0
    %345 = vmatpush1.msra.mxu0 0.0
    %346 = vmatprep.subr.mxu0 0.0
    %347 = vmatpush1.msra.mxu0 0.0
    %348 = vmatprep.mubr.f32.mxu0 0.0
    %349 = vmatmul.mubr.f32.gmra.mrb[0].mxu0 %v260
    %v350 = vpop.f32.mrb[0].mxu0
    %v351 = vadd.f32 %v282, %v350
    %v352 = vpop.f32.mrb[0].mxu0
    %353 = vdwg.mxu0
    %354 = vmax.xlane.f32.xlu0 %v351
    %v355 = vpop.xlane.xlu0 %354
    %v356 = vsub.f32 %v351, %v355
    %v357 = vmul.f32 %v356, 1.442695
    %v358 = vpow.pop %v357
    %359 = vadd.xlane.f32.xlu0 %v358
    %v360 = vpop.xlane.xlu0 %359
    %v361 = vrcp.pop %v360
    %v362 = vmul.f32 %v360, %v361
    %v363 = vsub.f32 2.0, %v362
    %v364 = vmul.f32 %v361, %v363
    %v365 = vmul.f32 %v358, %v364
    %vm366 = vcmask 64512
    %367 = vst.msk [vmem:[#allocation10] sm:$0xff] %vm366, %v365
    // Predicated region
    $region46: #{tpu_custom_call.1} parent=1 // pred_check
      _
    $region47: #{tpu_custom_call.1} parent=1 // pred_check_branch
      %369 = sbr.rel (0) target = $region49
    $region48: #{tpu_custom_call.1} parent=1 // pred_region
      %s371 = ssub.s32 128, 128
      %372 = vsyncadd [#allocation4], %s371
      %s374 = sshll.u32 [#allocation10], 4
      %s375 = int_to_ptr.vmem [resolvable:$true] %s374
      %377 = dma.vmem_to_hbm [thread:$0]  %s375, 128, %s7, [#allocation4]
    $region49: #{tpu_custom_call.1} parent=1 // pred_fallthru
      _
    // Predicated region
    $region50: #{tpu_custom_call.1} parent=1 // pred_check
      _
    $region51: #{tpu_custom_call.1} parent=1 // pred_check_branch
      %379 = sbr.rel (0) target = $region53
    $region52: #{tpu_custom_call.1} parent=1 // pred_region
      %380 = dma.done [#allocation4], 128
    $region53: #{tpu_custom_call.1} parent=1 // pred_fallthru
      _
    %381 = vsyncpa [#allocation3], 1
    %382 = vsyncpa [#allocation6], 1
    %383 = vsyncpa [#allocation9], 1
    %384 = vsyncpa [#allocation4], 1

</llo_original>
